<compile_context>
chip_gen: v7x
topology: tpu7x:2x2x1
jax: 0.10.0
libtpu: 0.0.40
codegen_flags: <defaults>
</compile_context>

<pallas_src>
import functools

import jax
import jax.numpy as jnp
from jax.experimental import pallas as pl
from jax.experimental.pallas import tpu as pltpu


def _round_up(x: int, m: int) -> int:
    return (x + m - 1) // m * m


def _chip_config():
    """(vmem_capacity_bytes, lane_alignment) chosen per TPU generation."""
    vmem = 64 * 1024 * 1024   # conservative default (v7x: 64 MiB per TC)
    align = 128               # v5e MXU width; always a correct choice
    try:
        kind = jax.devices()[0].device_kind.lower()
        if "v7" in kind:
            vmem, align = 64 * 1024 * 1024, 256
        elif "v6" in kind:
            vmem, align = 128 * 1024 * 1024, 256
        elif "v5" in kind:
            vmem, align = 128 * 1024 * 1024, 128
    except Exception:
        pass
    try:
        # Prefer the real capacity when the query is available; take the min
        # so a per-chip number on a 2-TC part can never over-report.
        vmem = min(vmem, int(pltpu.get_tpu_info().vmem_capacity_bytes))
    except Exception:
        pass
    return vmem, align


VMEM_BYTES, ALIGN = _chip_config()


# --------------------------------------------------------------------------
# Kernels
# --------------------------------------------------------------------------
def _dense_kernel_single(x_ref, w_ref, b_ref, o_ref, *, mxu_dtype):
    # Whole K in one block: no accumulator scratch, no init/finalize branches.
    x = x_ref[...]
    w = w_ref[...]
    if mxu_dtype is not None:
        x = x.astype(mxu_dtype)
        w = w.astype(mxu_dtype)
    acc = jnp.dot(x, w, preferred_element_type=jnp.float32)
    o_ref[...] = (acc + b_ref[...].astype(jnp.float32)).astype(o_ref.dtype)


def _dense_kernel_multik_f32(x_ref, w_ref, b_ref, o_ref, *, mxu_dtype):
    # K split over the grid; f32 output block is resident across k, so it IS
    # the accumulator (saves tm*tn*4 B of VMEM and the finalize copy).
    k = pl.program_id(2)

    @pl.when(k == 0)
    def _init():
        o_ref[...] = jnp.zeros_like(o_ref)

    x = x_ref[...]
    w = w_ref[...]
    if mxu_dtype is not None:
        x = x.astype(mxu_dtype)
        w = w.astype(mxu_dtype)
    o_ref[...] += jnp.dot(x, w, preferred_element_type=jnp.float32)

    @pl.when(k == pl.num_programs(2) - 1)
    def _finalize():
        o_ref[...] = o_ref[...] + b_ref[...].astype(o_ref.dtype)


def _dense_kernel_multik_scratch(x_ref, w_ref, b_ref, o_ref, acc_ref, *, mxu_dtype):
    # K split over the grid, non-f32 output: keep an f32 VMEM accumulator.
    k = pl.program_id(2)

    @pl.when(k == 0)
    def _init():
        acc_ref[...] = jnp.zeros_like(acc_ref)

    x = x_ref[...]
    w = w_ref[...]
    if mxu_dtype is not None:
        x = x.astype(mxu_dtype)
        w = w.astype(mxu_dtype)
    acc_ref[...] += jnp.dot(x, w, preferred_element_type=jnp.float32)

    @pl.when(k == pl.num_programs(2) - 1)
    def _finalize():
        o_ref[...] = (acc_ref[...] + b_ref[...].astype(jnp.float32)).astype(o_ref.dtype)


# --------------------------------------------------------------------------
# Parameter preparation (hoisted out of the hot path)
# --------------------------------------------------------------------------
def prepare_dense_params(weight, bias, *, align=ALIGN):
    """Transpose nn.Linear's [N, K] weight to MXU-native [K, N] and zero-pad
    both dims to the lane alignment — done ONCE, not per forward call."""
    n, k = weight.shape
    kp = _round_up(k, align)
    np_ = _round_up(n, align)
    w_kn = jnp.pad(weight.T, ((0, kp - k), (0, np_ - n)))
    b_row = jnp.pad(bias, (0, np_ - n)).reshape(1, np_)
    return w_kn, b_row


def _pick_tile(padded: int, cap: int, align: int) -> int:
    """Largest multiple of `align` that is <= cap and divides `padded`."""
    if padded <= cap:
        return padded
    t = max(align, (cap // align) * align)
    while padded % t:
        t -= align
    return t


# --------------------------------------------------------------------------
# Forward
# --------------------------------------------------------------------------
@functools.partial(jax.jit,
                   static_argnames=("n_out", "tm", "tn", "tk", "use_bf16_mxu"))
def dense_x(x, w_kn, b_row, *, n_out, tm=512, tn=1024, tk=1024,
            use_bf16_mxu=False):
    """y = x @ weight.T + bias, where (w_kn, b_row) = prepare_dense_params(...)."""
    lead_shape = x.shape[:-1]
    K = x.shape[-1]
    x2 = x.reshape(-1, K)
    B = x2.shape[0]
    Kp, Np = w_kn.shape
    assert K <= Kp and n_out <= Np, "params not prepared for this input"

    out_dtype = x.dtype
    in_bytes = jnp.dtype(x.dtype).itemsize
    out_bytes = jnp.dtype(out_dtype).itemsize
    mxu_dtype = jnp.bfloat16 if use_bf16_mxu else None

    # ---- tile selection: biggest aligned tiles that divide the padded dims.
    tm = min(tm, _round_up(B, 8))
    tn = _pick_tile(Np, tn, ALIGN)
    tk = _pick_tile(Kp, tk, ALIGN)
    Bp = _round_up(B, tm)

    # Megacore (v7x has 2 TCs): keep >=2 blocks along a parallel axis when the
    # alignment allows, so the grid never degenerates to (1, 1, K).
    if Bp // tm == 1 and Np // tn == 1 and tn % (2 * ALIGN) == 0:
        tn //= 2

    # ---- VMEM accounting; shrink tk (then tn) if we would blow the budget.
    budget = int(0.85 * VMEM_BYTES)

    def _est(tm_, tn_, tk_):
        e = 2 * (tm_ * tk_ + tk_ * tn_ + tn_) * in_bytes + 2 * tm_ * tn_ * out_bytes
        if tk_ != Kp and out_dtype != jnp.float32:
            e += tm_ * tn_ * 4  # f32 accumulator scratch
        return e

    while _est(tm, tn, tk) > budget and tk > ALIGN:
        tk = _pick_tile(Kp, tk // 2, ALIGN)
    while _est(tm, tn, tk) > budget and tn > ALIGN:
        tn = _pick_tile(Np, tn // 2, ALIGN)

    single_k = (tk == Kp)
    vmem_limit = min(budget, max(32 * 1024 * 1024, 2 * _est(tm, tn, tk)))

    # Only x is padded per call (unavoidable); weight/bias were padded at prep.
    x_p = jnp.pad(x2, ((0, Bp - B), (0, Kp - K)))

    cost = pl.CostEstimate(
        flops=2 * B * K * n_out,
        transcendentals=0,
        bytes_accessed=(B * K + Kp * Np + Np) * in_bytes + B * n_out * out_bytes,
    )

    if single_k:
        grid = (Bp // tm, Np // tn)
        kernel = functools.partial(_dense_kernel_single, mxu_dtype=mxu_dtype)
        in_specs = [
            pl.BlockSpec((tm, Kp), lambda i, j: (i, 0)),   # x strip
            pl.BlockSpec((Kp, tn), lambda i, j: (0, j)),   # weight [K, N] tile
            pl.BlockSpec((1, tn), lambda i, j: (0, j)),    # bias tile
        ]
        out_spec = pl.BlockSpec((tm, tn), lambda i, j: (i, j))
        scratch = []
        sem = ("parallel", "parallel")
    else:
        grid = (Bp // tm, Np // tn, Kp // tk)
        # TODO(synk): if the weight DMA is still exposed in traces, add
        # pipeline_mode=pl.Buffered(3) on the weight BlockSpec.
        in_specs = [
            pl.BlockSpec((tm, tk), lambda i, j, k: (i, k)),   # x tile
            pl.BlockSpec((tk, tn), lambda i, j, k: (k, j)),   # weight [K, N] tile
            pl.BlockSpec((1, tn), lambda i, j, k: (0, j)),    # bias tile
        ]
        out_spec = pl.BlockSpec((tm, tn), lambda i, j, k: (i, j))
        sem = ("parallel", "parallel", "arbitrary")
        if out_dtype == jnp.float32:
            kernel = functools.partial(_dense_kernel_multik_f32, mxu_dtype=mxu_dtype)
            scratch = []
        else:
            kernel = functools.partial(_dense_kernel_multik_scratch, mxu_dtype=mxu_dtype)
            scratch = [pltpu.VMEM((tm, tn), jnp.float32)]

    out_p = pl.pallas_call(
        kernel,
        out_shape=jax.ShapeDtypeStruct((Bp, Np), out_dtype),
        grid_spec=pltpu.PrefetchScalarGridSpec(
            num_scalar_prefetch=0,
            grid=grid,
            in_specs=in_specs,
            out_specs=out_spec,
            scratch_shapes=scratch,
        ),
        compiler_params=pltpu.CompilerParams(
            dimension_semantics=sem,
            vmem_limit_bytes=int(vmem_limit),
        ),
        cost_estimate=cost,
    )(x_p, w_kn, b_row)

    y = out_p[:B, :n_out]
    return y.reshape(*lead_shape, n_out)


def init_dense_params(key, input_dim, output_dim, dtype=jnp.float32):
    """Deterministic init mimicking torch.nn.Linear's default (uniform +-1/sqrt(in))."""
    kw, kb = jax.random.split(key)
    bound = 1.0 / jnp.sqrt(jnp.asarray(input_dim, dtype))
    weight = jax.random.uniform(kw, (output_dim, input_dim), dtype,
                                minval=-bound, maxval=bound)
    bias = jax.random.uniform(kb, (output_dim,), dtype,
                              minval=-bound, maxval=bound)
    return weight, bias


if __name__ == "__main__":
    input_dim, output_dim = 32, 64
    batch = 8

    key = jax.random.PRNGKey(0)
    kx, kp = jax.random.split(key)
    x = jax.random.normal(kx, (batch, input_dim), dtype=jnp.float32)
    weight, bias = init_dense_params(kp, input_dim, output_dim)

    # One-time parameter prep (transpose to [K, N] + pad) outside the hot path.
    w_kn, b_row = prepare_dense_params(weight, bias)

    y = dense_x(x, w_kn, b_row, n_out=output_dim)
    y = jax.block_until_ready(y)

    # Sanity check against plain-JAX reference of nn.Linear semantics.
    y_ref = x @ weight.T + bias
    assert y.shape == (batch, output_dim)
    assert jnp.allclose(y, y_ref, atol=1e-5, rtol=1e-5)

    print("KERNEL_OK")
</pallas_src>

<mosaic_0001>
module attributes {stable_mosaic.version = 11 : i64} {
  func.func @_dense_kernel_single(%arg0: i32, %arg1: i32, %arg2: memref<8x128xf32, #tpu.memory_space<vmem>>, %arg3: memref<128x128xf32, #tpu.memory_space<vmem>>, %arg4: memref<1x128xf32, #tpu.memory_space<vmem>>, %arg5: memref<8x128xf32, #tpu.memory_space<vmem>>) attributes {dimension_semantics = [#tpu.dimension_semantics<parallel>, #tpu.dimension_semantics<parallel>], iteration_bounds = array<i64: 1, 1>, scalar_prefetch = 0 : i64, scratch_operands = 0 : i64, tpu.core_type = #tpu.core_type<tc>, window_params = [{transform_indices = @transform_0, window_bounds = array<i64: 8, 128>}, {transform_indices = @transform_1, window_bounds = array<i64: 128, 128>}, {transform_indices = @transform_2, window_bounds = array<i64: 1, 128>}, {transform_indices = @transform_3, window_bounds = array<i64: 8, 128>}]} {
    %c0 = arith.constant 0 : index
    %c0_0 = arith.constant 0 : index
    %0 = vector.load %arg2[%c0, %c0_0] : memref<8x128xf32, #tpu.memory_space<vmem>>, vector<8x128xf32>
    %c0_1 = arith.constant 0 : index
    %c0_2 = arith.constant 0 : index
    %1 = vector.load %arg3[%c0_1, %c0_2] : memref<128x128xf32, #tpu.memory_space<vmem>>, vector<128x128xf32>
    %cst = arith.constant dense<0.000000e+00> : vector<8x128xf32>
    %2 = tpu.matmul %0, %1, %cst {dimension_numbers = #tpu.dot_dimension_numbers<[1], [0], [0], [1], [0, 0, 1, 1], [], []>} : vector<8x128xf32>, vector<128x128xf32>, vector<8x128xf32> -> vector<8x128xf32>
    %c0_3 = arith.constant 0 : index
    %c0_4 = arith.constant 0 : index
    %3 = vector.load %arg4[%c0_3, %c0_4] : memref<1x128xf32, #tpu.memory_space<vmem>>, vector<1x128xf32>
    %4 = vector.broadcast %3 : vector<1x128xf32> to vector<8x128xf32>
    %5 = arith.addf %2, %4 : vector<8x128xf32>
    %c0_5 = arith.constant 0 : index
    %c0_6 = arith.constant 0 : index
    %6 = vector.load %arg5[%c0_5, %c0_6] : memref<8x128xf32, #tpu.memory_space<vmem>>, vector<8x128xf32>
    tpu.vector_store %arg5[%c0_5, %c0_6], %5 {strides = array<i32>} : memref<8x128xf32, #tpu.memory_space<vmem>>, vector<8x128xf32>,
    return
  }
  func.func @transform_0(%arg0: i32, %arg1: i32) -> (i32, i32) {
    %c0_i32 = arith.constant 0 : i32
    %c0_i32_0 = arith.constant 0 : i32
    return %arg0, %c0_i32 : i32, i32
  }
  func.func @transform_1(%arg0: i32, %arg1: i32) -> (i32, i32) {
    %c0_i32 = arith.constant 0 : i32
    %c0_i32_0 = arith.constant 0 : i32
    return %c0_i32, %arg1 : i32, i32
  }
  func.func @transform_2(%arg0: i32, %arg1: i32) -> (i32, i32) {
    %c0_i32 = arith.constant 0 : i32
    %c0_i32_0 = arith.constant 0 : i32
    return %c0_i32, %arg1 : i32, i32
  }
  func.func @transform_3(%arg0: i32, %arg1: i32) -> (i32, i32) {
    %c0_i32 = arith.constant 0 : i32
    return %arg0, %arg1 : i32, i32
  }
}

</mosaic_0001>

<llo_original>
// kernel: dense_x.1
$region0: #{dense_x.1}
  #allocation0 [shape = 'u32[]', space=smem, size = 0x4, offset = 0x4, fixed_abs, tag = 'smem constant byte address 0x4 - core index']
  #allocation1 [shape = 'u32[144,128]{1,0:T(1,128)}', space=vmem, size = 0x12000, scoped, tag = 'internal scratch']
  %s0 = inlined_call_operand.vmem [shape: f32[8,128], index: 0, kind: input, shape index: {}]
  %s1 = inlined_call_operand.hbm [shape: f32[128,128], index: 1, kind: input, shape index: {}]
  %s2 = inlined_call_operand.vmem [shape: f32[1,128], index: 2, kind: input, shape index: {}]
  %s3 = inlined_call_operand.hbm [shape: f32[8,128], index: 3, kind: output, shape index: {}]
  %s4 = sld [smem:[#allocation0]]
  $region26: #{dense_x.1} parent=0
    _
  %s6 = ssub.s32 1, %s4
  %s7 = scalar_select 0, %s6, %s4
  $region1: #{dense_x.1} parent=0
    #allocation2 [shape = 'u8[65536]{0}', space=vmem, size = 0x10000, scoped, tag = 'input window, operand 1, single buffered']
    #allocation3 [shape = 's32[1]{0}', space=sflag, size = 0x4, scoped, tag = 'scoped memory for dense_x.1']
    #allocation4 [shape = 's32[1]{0}', space=sflag, size = 0x4, scoped, tag = 'scoped memory for dense_x.1']
    #allocation5 [shape = 'u8[4096]{0}', space=vmem, size = 0x1000, scoped, tag = 'output window, operand 0, single buffered']
    %8 = vsyncpa [#allocation3], 0
    %9 = vsyncpa [#allocation4], 0
    // Predicated region
    $region2: #{dense_x.1} parent=1 // pred_check
      _
    $region3: #{dense_x.1} parent=1 // pred_check_branch
      %11 = sbr.rel (0) target = $region5
    $region4: #{dense_x.1} parent=1 // pred_region
      _
    $region5: #{dense_x.1} parent=1 // pred_fallthru
      _
    // Predicated region
    $region6: #{dense_x.1} parent=1 // pred_check
      _
    $region7: #{dense_x.1} parent=1 // pred_check_branch
      %13 = sbr.rel (0) target = $region9
    $region8: #{dense_x.1} parent=1 // pred_region
      %s15 = ssub.s32 2048, 2048
      %16 = vsyncadd [#allocation3], %s15
      %s17 = sshll.u32 [#allocation2], 4
      %s18 = int_to_ptr.vmem [resolvable:$true] %s17
      %23 = dma.hbm_to_vmem [thread:$0]  %s1, 2048, %s18, [#allocation3], 128, 128, 8
    $region9: #{dense_x.1} parent=1 // pred_fallthru
      _
    // Predicated region
    $region10: #{dense_x.1} parent=1 // pred_check
      _
    $region11: #{dense_x.1} parent=1 // pred_check_branch
      %25 = sbr.rel (0) target = $region13
    $region12: #{dense_x.1} parent=1 // pred_region
      _
    $region13: #{dense_x.1} parent=1 // pred_fallthru
      _
    // Predicated region
    $region14: #{dense_x.1} parent=1 // pred_check
      _
    $region15: #{dense_x.1} parent=1 // pred_check_branch
      %27 = sbr.rel (0) target = $region17
    $region16: #{dense_x.1} parent=1 // pred_region
      %28 = dma.done [#allocation3], 2048
    $region17: #{dense_x.1} parent=1 // pred_fallthru
      _
    %v29 = vld [vmem:[%s0] sm:$0xff]
    %v30 = vld [vmem:[#allocation2] sm:$0xff]
    %v31 = vld [vmem:[#allocation2 + $0x8] sm:$0xff]
    %v32 = vld [vmem:[#allocation2 + $0x10] sm:$0xff]
    %v33 = vld [vmem:[#allocation2 + $0x18] sm:$0xff]
    %v34 = vld [vmem:[#allocation2 + $0x20] sm:$0xff]
    %v35 = vld [vmem:[#allocation2 + $0x28] sm:$0xff]
    %v36 = vld [vmem:[#allocation2 + $0x30] sm:$0xff]
    %v37 = vld [vmem:[#allocation2 + $0x38] sm:$0xff]
    %v38 = vld [vmem:[#allocation2 + $0x40] sm:$0xff]
    %v39 = vld [vmem:[#allocation2 + $0x48] sm:$0xff]
    %v40 = vld [vmem:[#allocation2 + $0x50] sm:$0xff]
    %v41 = vld [vmem:[#allocation2 + $0x58] sm:$0xff]
    %v42 = vld [vmem:[#allocation2 + $0x60] sm:$0xff]
    %v43 = vld [vmem:[#allocation2 + $0x68] sm:$0xff]
    %v44 = vld [vmem:[#allocation2 + $0x70] sm:$0xff]
    %v45 = vld [vmem:[#allocation2 + $0x78] sm:$0xff]
    %v46 = vld [vmem:[%s2] sm:$0x1]
    %v48 = vlaneseq
    %v49 = vshrl.u32 %v48, 7
    %v50 = vsub.s32 0, %v49
    %v51 = vrot.slane %v46, %v50
    %53 = vmatprep.subr.mxu0 0.0
    %54 = vmatpush1.msra.mxu0 %v30
    %55 = vmatprep.subr.mxu0 0.0
    %56 = vmatpush1.msra.mxu0 %v31
    %57 = vmatprep.subr.mxu0 0.0
    %58 = vmatpush1.msra.mxu0 %v32
    %59 = vmatprep.subr.mxu0 0.0
    %60 = vmatpush1.msra.mxu0 %v33
    %61 = vmatprep.subr.mxu0 0.0
    %62 = vmatpush1.msra.mxu0 %v34
    %63 = vmatprep.subr.mxu0 0.0
    %64 = vmatpush1.msra.mxu0 %v35
    %65 = vmatprep.subr.mxu0 0.0
    %66 = vmatpush1.msra.mxu0 %v36
    %67 = vmatprep.subr.mxu0 0.0
    %68 = vmatpush1.msra.mxu0 %v37
    %69 = vmatprep.subr.mxu0 0.0
    %70 = vmatpush1.msra.mxu0 %v38
    %71 = vmatprep.subr.mxu0 0.0
    %72 = vmatpush1.msra.mxu0 %v39
    %73 = vmatprep.subr.mxu0 0.0
    %74 = vmatpush1.msra.mxu0 %v40
    %75 = vmatprep.subr.mxu0 0.0
    %76 = vmatpush1.msra.mxu0 %v41
    %77 = vmatprep.subr.mxu0 0.0
    %78 = vmatpush1.msra.mxu0 %v42
    %79 = vmatprep.subr.mxu0 0.0
    %80 = vmatpush1.msra.mxu0 %v43
    %81 = vmatprep.subr.mxu0 0.0
    %82 = vmatpush1.msra.mxu0 %v44
    %83 = vmatprep.subr.mxu0 0.0
    %84 = vmatpush1.msra.mxu0 %v45
    %85 = vmatprep.subr.mxu0 0.0
    %86 = vmatpush1.msra.mxu0 0.0
    %87 = vmatprep.subr.mxu0 0.0
    %88 = vmatpush1.msra.mxu0 0.0
    %89 = vmatprep.subr.mxu0 0.0
    %90 = vmatpush1.msra.mxu0 0.0
    %91 = vmatprep.subr.mxu0 0.0
    %92 = vmatpush1.msra.mxu0 0.0
    %93 = vmatprep.subr.mxu0 0.0
    %94 = vmatpush1.msra.mxu0 0.0
    %95 = vmatprep.subr.mxu0 0.0
    %96 = vmatpush1.msra.mxu0 0.0
    %97 = vmatprep.subr.mxu0 0.0
    %98 = vmatpush1.msra.mxu0 0.0
    %99 = vmatprep.subr.mxu0 0.0
    %100 = vmatpush1.msra.mxu0 0.0
    %101 = vmatprep.subr.mxu0 0.0
    %102 = vmatpush1.msra.mxu0 0.0
    %103 = vmatprep.subr.mxu0 0.0
    %104 = vmatpush1.msra.mxu0 0.0
    %105 = vmatprep.subr.mxu0 0.0
    %106 = vmatpush1.msra.mxu0 0.0
    %107 = vmatprep.subr.mxu0 0.0
    %108 = vmatpush1.msra.mxu0 0.0
    %109 = vmatprep.subr.mxu0 0.0
    %110 = vmatpush1.msra.mxu0 0.0
    %111 = vmatprep.subr.mxu0 0.0
    %112 = vmatpush1.msra.mxu0 0.0
    %113 = vmatprep.subr.mxu0 0.0
    %114 = vmatpush1.msra.mxu0 0.0
    %115 = vmatprep.subr.mxu0 0.0
    %116 = vmatpush1.msra.mxu0 0.0
    %117 = vmatprep.mubr.f32.mxu0 0.0
    %118 = vmatmul.mubr.f32.gmra.mrb[0].mxu0 %v29
    %v119 = vpop.f32.mrb[0].mxu0
    %v120 = vadd.f32 %v51, %v119
    %v121 = vpop.f32.mrb[0].mxu0
    %122 = vdwg.mxu0
    %123 = vst [vmem:[#allocation5] sm:$0xff] %v120
    // Predicated region
    $region18: #{dense_x.1} parent=1 // pred_check
      _
    $region19: #{dense_x.1} parent=1 // pred_check_branch
      %125 = sbr.rel (0) target = $region21
    $region20: #{dense_x.1} parent=1 // pred_region
      %s127 = ssub.s32 128, 128
      %128 = vsyncadd [#allocation4], %s127
      %s130 = sshll.u32 [#allocation5], 4
      %s131 = int_to_ptr.vmem [resolvable:$true] %s130
      %133 = dma.vmem_to_hbm [thread:$0]  %s131, 128, %s3, [#allocation4]
    $region21: #{dense_x.1} parent=1 // pred_fallthru
      _
    // Predicated region
    $region22: #{dense_x.1} parent=1 // pred_check
      _
    $region23: #{dense_x.1} parent=1 // pred_check_branch
      %135 = sbr.rel (0) target = $region25
    $region24: #{dense_x.1} parent=1 // pred_region
      %136 = dma.done [#allocation4], 128
    $region25: #{dense_x.1} parent=1 // pred_fallthru
      _
    %137 = vsyncpa [#allocation3], 1
    %138 = vsyncpa [#allocation4], 1

</llo_original>
